<compile_context>
chip_gen: v7x
topology: tpu7x:2x2x1
jax: 0.10.0
libtpu: 0.0.40
codegen_flags: <defaults>
</compile_context>

<pallas_src>
import functools
import math

import jax
import jax.numpy as jnp
from jax import lax
from jax.experimental import pallas as pl
from jax.experimental.pallas import tpu as pltpu

EPS = 1e-5


# ------------------------- generation-dependent config ------------------------
def _hw_config():
    vmem = 128 << 20
    try:
        info = pltpu.get_tpu_info()
        vmem = int(getattr(info, "vmem_capacity_bytes", vmem) or vmem)
    except Exception:
        pass
    if vmem >= (100 << 20):
        # v5e / v6e: 128 MiB VMEM -> big tiles (better HBM roofline), generous budget.
        return {"tm": 512, "tn": 512, "tk": 512, "th": 512, "limit": 96 << 20}
    # v7x: 64 MiB VMEM -> smaller tiles, leave DMA headroom.
    return {"tm": 256, "tn": 512, "tk": 512, "th": 256, "limit": 48 << 20}


_CFG = _hw_config()


def _tile(full, want, aligns=(256, 128)):
    """Largest multiple of one of `aligns` that divides `full` and is <= want, else full."""
    if full <= want:
        return full
    for a in aligns:
        t = (min(want, full) // a) * a
        while t >= a:
            if full % t == 0:
                return t
            t -= a
    return full


# ----------------- fused RMSNorm + matmul (QKV projection) --------------------
def _norm_matmul_kernel(x_ref, g_ref, w_ref, o_ref, xn_ref, *, eps):
    # RMSNorm computed once per row block, cached in bf16 scratch, reused for all j.
    @pl.when(pl.program_id(1) == 0)
    def _():
        x = x_ref[...]                                     # (tm, D) f32
        ms = jnp.mean(x * x, axis=-1, keepdims=True)
        xn_ref[...] = (x * lax.rsqrt(ms + eps) * g_ref[...]).astype(jnp.bfloat16)

    o_ref[...] = jnp.dot(xn_ref[...], w_ref[...],
                         preferred_element_type=jnp.float32).astype(o_ref.dtype)


def norm_matmul(x2d, gamma, w, eps=EPS):
    M, D = x2d.shape
    N = w.shape[1]
    tm = _tile(M, _CFG["tm"], (16, 8))
    tn = _tile(N, _CFG["tn"], (256, 128))
    budget = int(_CFG["limit"] * 0.9)
    while (10 * tm * D + 4 * D * tn + 4 * tm * tn) > budget:
        new_tm = _tile(M, max(tm // 2, 16), (16, 8))
        if new_tm >= tm:
            break
        tm = new_tm
    cost = pl.CostEstimate(
        flops=int(2 * M * D * N),
        transcendentals=int(M),
        bytes_accessed=int(M * D * 4 + D * N * 2 + M * N * 2),
    )
    return pl.pallas_call(
        functools.partial(_norm_matmul_kernel, eps=eps),
        out_shape=jax.ShapeDtypeStruct((M, N), jnp.bfloat16),
        grid=(M // tm, N // tn),
        in_specs=[
            pl.BlockSpec((tm, D), lambda i, j: (i, 0)),
            pl.BlockSpec((1, D), lambda i, j: (0, 0)),
            pl.BlockSpec((D, tn), lambda i, j: (0, j)),
        ],
        out_specs=pl.BlockSpec((tm, tn), lambda i, j: (i, j)),
        scratch_shapes=[pltpu.VMEM((tm, D), jnp.bfloat16)],
        compiler_params=pltpu.CompilerParams(
            dimension_semantics=("parallel", "arbitrary"),
            vmem_limit_bytes=_CFG["limit"]),
        cost_estimate=cost,
    )(x2d, gamma.reshape(1, D), w)


# -------- tiled matmul with f32 accumulator + fused residual add (wo) ---------
def _matmul_res_kernel(x_ref, w_ref, r_ref, o_ref, acc_ref):
    @pl.when(pl.program_id(2) == 0)
    def _():
        acc_ref[...] = jnp.zeros_like(acc_ref)

    acc_ref[...] += jnp.dot(x_ref[...], w_ref[...],
                            preferred_element_type=jnp.float32)

    @pl.when(pl.program_id(2) == pl.num_programs(2) - 1)
    def _():
        o_ref[...] = r_ref[...] + acc_ref[...]


def matmul_residual(x2d, w, res2d):
    M, K = x2d.shape
    N = w.shape[1]
    tm = _tile(M, _CFG["tm"], (16, 8))
    tn = _tile(N, _CFG["tn"], (256, 128))
    tk = _tile(K, _CFG["tk"], (256, 128))
    cost = pl.CostEstimate(
        flops=int(2 * M * K * N),
        transcendentals=0,
        bytes_accessed=int(M * K * 2 + K * N * 2 + 2 * M * N * 4),
    )
    return pl.pallas_call(
        _matmul_res_kernel,
        out_shape=jax.ShapeDtypeStruct((M, N), jnp.float32),
        grid=(M // tm, N // tn, K // tk),
        in_specs=[
            pl.BlockSpec((tm, tk), lambda i, j, k: (i, k)),
            pl.BlockSpec((tk, tn), lambda i, j, k: (k, j)),
            pl.BlockSpec((tm, tn), lambda i, j, k: (i, j)),
        ],
        out_specs=pl.BlockSpec((tm, tn), lambda i, j, k: (i, j)),
        scratch_shapes=[pltpu.VMEM((tm, tn), jnp.float32)],
        compiler_params=pltpu.CompilerParams(
            dimension_semantics=("parallel", "parallel", "arbitrary"),
            vmem_limit_bytes=_CFG["limit"]),
        cost_estimate=cost,
    )(x2d, w, res2d)


# ---------------- global softmax over the sequence axis (keys) ----------------
def _seq_softmax_kernel(k_ref, o_ref):
    k = k_ref[0]                                           # (S, hd) f32
    m = jnp.max(k, axis=0, keepdims=True)
    e = jnp.exp(k - m)
    o_ref[0] = (e / jnp.sum(e, axis=0, keepdims=True)).astype(o_ref.dtype)


def seq_softmax(k):
    BK, S, D = k.shape
    return pl.pallas_call(
        _seq_softmax_kernel,
        out_shape=jax.ShapeDtypeStruct((BK, S, D), jnp.bfloat16),
        grid=(BK,),
        in_specs=[pl.BlockSpec((1, S, D), lambda i: (i, 0, 0))],
        out_specs=pl.BlockSpec((1, S, D), lambda i: (i, 0, 0)),
        compiler_params=pltpu.CompilerParams(
            dimension_semantics=("parallel",),
            vmem_limit_bytes=_CFG["limit"]),
    )(k)


# --------------- chunked causal linear attention (per kv head) ----------------
def _attn_kernel(q_ref, k_ref, v_ref, o_ref, state_ref, *, scale):
    c = pl.program_id(1)

    @pl.when(c == 0)
    def _():
        state_ref[...] = jnp.zeros_like(state_ref)

    q = q_ref[0].astype(jnp.float32)                       # (n_rep, Tc, hd)
    # softmax over head_dim for q  (F.softmax(q * d^-0.5, dim=-1)), exact denominator
    qq = q * scale
    qe = jnp.exp(qq - jnp.max(qq, axis=-1, keepdims=True))
    qs = (qe / jnp.sum(qe, axis=-1, keepdims=True)).astype(jnp.bfloat16)

    ks = k_ref[0]                                          # (Tc, hd) bf16, seq-softmaxed
    v = v_ref[0]                                           # (Tc, hd) bf16

    # running prefix state (sum over all previous chunks of ks_j^T v_j)
    state_b = state_ref[...].astype(jnp.bfloat16)          # (hd, hd)

    # intra-chunk causal mask (chunk-local indices; q and k chunks are aligned)
    tc = ks.shape[0]
    row = lax.broadcasted_iota(jnp.int32, (tc, tc), 0)
    col = lax.broadcasted_iota(jnp.int32, (tc, tc), 1)
    causal = row >= col

    n_rep = q.shape[0]
    for r in range(n_rep):                                 # static unroll over the kv group
        qs_r = qs[r]                                       # (Tc, hd) bf16
        out_r = jnp.dot(qs_r, state_b, preferred_element_type=jnp.float32)
        s = lax.dot_general(qs_r, ks, (((1,), (1,)), ((), ())),
                            preferred_element_type=jnp.float32)   # (Tc, Tc)
        s = jnp.where(causal, s, 0.0).astype(jnp.bfloat16)
        out_r += jnp.dot(s, v, preferred_element_type=jnp.float32)
        o_ref[0, r] = out_r.astype(o_ref.dtype)

    # state update for the following chunks (done once per kv head, not per q head)
    state_ref[...] += lax.dot_general(ks, v, (((0,), (0,)), ((), ())),
                                      preferred_element_type=jnp.float32)


def linear_causal_attention(q, ks, v):
    # q: [B*Hkv, n_rep, S, hd] f32;  ks, v: [B*Hkv, S, hd] bf16 (ks seq-softmaxed)
    BK, n_rep, S, D = q.shape
    tc = _tile(S, 256, (16, 8))
    scale = 1.0 / math.sqrt(D)
    cost = pl.CostEstimate(
        flops=int(2 * BK * n_rep * S * (tc + 2 * D) * D + 2 * BK * S * D * D),
        transcendentals=int(BK * n_rep * S * D),
        bytes_accessed=int(BK * n_rep * S * D * 6 + 2 * BK * S * D * 2),
    )
    q_spec = pl.BlockSpec((1, n_rep, tc, D), lambda i, c: (i, 0, c, 0))
    o_spec = pl.BlockSpec((1, n_rep, tc, D), lambda i, c: (i, 0, c, 0))
    kv_spec = pl.BlockSpec((1, tc, D), lambda i, c: (i, c, 0))
    return pl.pallas_call(
        functools.partial(_attn_kernel, scale=scale),
        out_shape=jax.ShapeDtypeStruct((BK, n_rep, S, D), jnp.bfloat16),
        grid=(BK, S // tc),
        in_specs=[q_spec, kv_spec, kv_spec],
        out_specs=o_spec,
        scratch_shapes=[pltpu.VMEM((D, D), jnp.float32)],
        compiler_params=pltpu.CompilerParams(
            dimension_semantics=("parallel", "arbitrary"),
            vmem_limit_bytes=_CFG["limit"]),
        cost_estimate=cost,
    )(q, ks, v)


# -------- fused RMSNorm + SwiGLU FFN (w1/w3, SiLU, w2) + residual add ----------
def _ffn_kernel(h_ref, g_ref, w1_ref, w3_ref, w2_ref, o_ref, xn_ref, acc_ref, *, eps):
    j = pl.program_id(1)

    @pl.when(j == 0)
    def _():
        x = h_ref[...]                                     # (tm, D) f32 (residual too)
        ms = jnp.mean(x * x, axis=-1, keepdims=True)
        xn_ref[...] = (x * lax.rsqrt(ms + eps) * g_ref[...]).astype(jnp.bfloat16)
        acc_ref[...] = jnp.zeros_like(acc_ref)

    xn = xn_ref[...]
    h1 = jnp.dot(xn, w1_ref[...], preferred_element_type=jnp.float32)   # (tm, th)
    h3 = jnp.dot(xn, w3_ref[...], preferred_element_type=jnp.float32)
    # stable SiLU: x * sigmoid(x), sigmoid(x) = 0.5*(tanh(x/2)+1)  (EUP tanh slot)
    gate = h1 * (0.5 * (jnp.tanh(0.5 * h1) + 1.0))
    acc_ref[...] += jnp.dot((gate * h3).astype(jnp.bfloat16), w2_ref[...],
                            preferred_element_type=jnp.float32)

    @pl.when(j == pl.num_programs(1) - 1)
    def _():
        o_ref[...] = h_ref[...] + acc_ref[...]


def _ffn_tiles(M, D, H):
    tm = _tile(M, _CFG["tm"], (16, 8))
    th = _tile(H, _CFG["th"], (256, 128))
    budget = int(_CFG["limit"] * 0.9)

    def need(tm_, th_):
        # h x2 + out x2 + acc + xn scratch   +   w1/w3/w2 double-buffered bf16
        return 22 * tm_ * D + 12 * D * th_

    while need(tm, th) > budget:
        new_th = _tile(H, max(th // 2, 128), (256, 128))
        if new_th < th:
            th = new_th
            continue
        new_tm = _tile(M, max(tm // 2, 16), (16, 8))
        if new_tm < tm:
            tm = new_tm
            continue
        break
    return tm, th


def swiglu_ffn(h2d, gamma, w1, w3, w2, eps=EPS):
    M, D = h2d.shape
    H = w1.shape[1]
    tm, th = _ffn_tiles(M, D, H)
    cost = pl.CostEstimate(
        flops=int(6 * M * D * H),
        transcendentals=int(M * H + M),
        bytes_accessed=int(2 * M * D * 4 + 3 * D * H * 2),
    )
    return pl.pallas_call(
        functools.partial(_ffn_kernel, eps=eps),
        out_shape=jax.ShapeDtypeStruct((M, D), jnp.float32),
        grid=(M // tm, H // th),
        in_specs=[
            pl.BlockSpec((tm, D), lambda i, j: (i, 0)),
            pl.BlockSpec((1, D), lambda i, j: (0, 0)),
            pl.BlockSpec((D, th), lambda i, j: (0, j)),
            pl.BlockSpec((D, th), lambda i, j: (0, j)),
            pl.BlockSpec((th, D), lambda i, j: (j, 0)),
        ],
        out_specs=pl.BlockSpec((tm, D), lambda i, j: (i, 0)),
        scratch_shapes=[pltpu.VMEM((tm, D), jnp.bfloat16),
                        pltpu.VMEM((tm, D), jnp.float32)],
        compiler_params=pltpu.CompilerParams(
            dimension_semantics=("parallel", "arbitrary"),
            vmem_limit_bytes=_CFG["limit"]),
        cost_estimate=cost,
    )(h2d, gamma.reshape(1, D), w1, w3, w2)


# ----------------------------- JAX glue (RoPE etc.) ---------------------------
def precompute_freqs_cis(seq_len, head_dim, theta=10000.0):
    freqs = 1.0 / (theta ** (jnp.arange(0, head_dim, 2, dtype=jnp.float32) / head_dim))
    t = jnp.arange(seq_len, dtype=jnp.float32)
    ang = jnp.outer(t, freqs)                              # [S, hd/2]
    return jnp.cos(ang), jnp.sin(ang)


def apply_rotary_emb(xq, xk, cos, sin):
    # x*: [B, S, H, hd]; interleaved pairs (x[2i], x[2i+1]) like view_as_complex
    def rot(x):
        B, S, H, D = x.shape
        xr = x.reshape(B, S, H, D // 2, 2)
        x0, x1 = xr[..., 0], xr[..., 1]
        c = cos[None, :, None, :]
        s = sin[None, :, None, :]
        o0 = x0 * c - x1 * s
        o1 = x0 * s + x1 * c
        return jnp.stack([o0, o1], axis=-1).reshape(B, S, H, D)

    return rot(xq), rot(xk)


def linear_transformer_block(x, freqs, params):
    B, S, dim = x.shape
    cos, sin = freqs
    p = params
    n_heads, n_kv = p["n_heads"], p["n_kv_heads"]
    hd = dim // n_heads
    qd, kd = n_heads * hd, n_kv * hd
    n_rep = n_heads // n_kv
    M = B * S

    x2d = x.reshape(M, dim)

    # --- attention branch: fused RMSNorm + QKV projection (bf16 activations out) ---
    qkv = norm_matmul(x2d, p["attn_norm_w"], p["wqkv"])            # [M, qd+2*kd] bf16
    xq = qkv[:, :qd].astype(jnp.float32).reshape(B, S, n_heads, hd)
    xk = qkv[:, qd:qd + kd].astype(jnp.float32).reshape(B, S, n_kv, hd)
    xv = qkv[:, qd + kd:].reshape(B, S, n_kv, hd)                  # bf16
    xq, xk = apply_rotary_emb(xq, xk, cos, sin)

    # head-major layouts for the per-kv-head chunked attention (GQA groups contiguous)
    q = jnp.transpose(xq, (0, 2, 1, 3)).reshape(B * n_kv, n_rep, S, hd)
    k = jnp.transpose(xk, (0, 2, 1, 3)).reshape(B * n_kv, S, hd)
    v = jnp.transpose(xv, (0, 2, 1, 3)).reshape(B * n_kv, S, hd)

    ks = seq_softmax(k)                                            # global softmax over seq
    attn = linear_causal_attention(q, ks, v)                       # [B*Hkv, n_rep, S, hd] bf16
    attn2d = (attn.reshape(B, n_kv, n_rep, S, hd)
                  .transpose(0, 3, 1, 2, 4).reshape(M, qd))

    # output projection with the residual add fused into the epilogue
    h2d = matmul_residual(attn2d, p["wo"], x2d)

    # --- feed-forward branch: fused RMSNorm + SwiGLU + residual ---
    out2d = swiglu_ffn(h2d, p["ffn_norm_w"], p["w1"], p["w3"], p["w2"])
    return out2d.reshape(B, S, dim)


# --------------------------- pure-JAX reference -------------------------------
def _reference(x, freqs, p):
    B, S, dim = x.shape
    cos, sin = freqs
    n_heads, n_kv = p["n_heads"], p["n_kv_heads"]
    hd = dim // n_heads
    qd, kd = n_heads * hd, n_kv * hd
    n_rep = n_heads // n_kv
    M = B * S

    def rms(t, w):
        return t * lax.rsqrt(jnp.mean(t * t, axis=-1, keepdims=True) + EPS) * w

    xn = rms(x.reshape(M, dim), p["attn_norm_w"]).astype(jnp.bfloat16)
    qkv = jnp.dot(xn, p["wqkv"], preferred_element_type=jnp.float32).astype(jnp.bfloat16)
    xq = qkv[:, :qd].astype(jnp.float32).reshape(B, S, n_heads, hd)
    xk = qkv[:, qd:qd + kd].astype(jnp.float32).reshape(B, S, n_kv, hd)
    xv = qkv[:, qd + kd:].reshape(B, S, n_kv, hd)
    xq, xk = apply_rotary_emb(xq, xk, cos, sin)
    xk = jnp.repeat(xk, n_rep, axis=2)
    xv = jnp.repeat(xv, n_rep, axis=2)
    q = jnp.transpose(xq, (0, 2, 1, 3))                            # [B,H,S,hd]
    k = jnp.transpose(xk, (0, 2, 1, 3))
    v = jnp.transpose(xv, (0, 2, 1, 3)).astype(jnp.bfloat16)
    qs = jax.nn.softmax(q * hd ** (-0.5), axis=-1).astype(jnp.bfloat16)
    ks = jax.nn.softmax(k, axis=2).astype(jnp.bfloat16)
    a = jnp.einsum("bhnd,bhmd->bhnm", qs, ks, preferred_element_type=jnp.float32)
    mask = jnp.tril(jnp.ones((S, S), jnp.float32))
    attn = jnp.einsum("bhnm,bhme->bhne", (a * mask).astype(jnp.bfloat16), v,
                      preferred_element_type=jnp.float32).astype(jnp.bfloat16)
    attn = attn.transpose(0, 2, 1, 3).reshape(M, qd)
    h = x.reshape(M, dim) + jnp.dot(attn, p["wo"], preferred_element_type=jnp.float32)
    hn = rms(h, p["ffn_norm_w"]).astype(jnp.bfloat16)
    h1 = jnp.dot(hn, p["w1"], preferred_element_type=jnp.float32)
    h3 = jnp.dot(hn, p["w3"], preferred_element_type=jnp.float32)
    f = jnp.dot((h1 * jax.nn.sigmoid(h1) * h3).astype(jnp.bfloat16), p["w2"],
                preferred_element_type=jnp.float32)
    return (h + f).reshape(B, S, dim)


# --------------------------------- main ----------------------------------------
if __name__ == "__main__":
    B, S, dim = 2, 8, 32
    n_heads, n_kv_heads = 4, 2
    hd = dim // n_heads
    multiple_of = 16
    hidden = 4 * dim
    hidden = int(2 * hidden / 3)
    hidden = multiple_of * ((hidden + multiple_of - 1) // multiple_of)  # 96

    key = jax.random.PRNGKey(0)
    ks = jax.random.split(key, 9)

    def w(k, shape, std=0.02):
        # nn.Linear weights pre-transposed to [in, out]; stored bf16 for the MXU.
        return (std * jax.random.normal(k, shape, dtype=jnp.float32)).astype(jnp.bfloat16)

    wq = w(ks[0], (dim, n_heads * hd))
    wk = w(ks[1], (dim, n_kv_heads * hd))
    wv = w(ks[2], (dim, n_kv_heads * hd))

    params = {
        "n_heads": n_heads,
        "n_kv_heads": n_kv_heads,
        "wqkv": jnp.concatenate([wq, wk, wv], axis=1),   # fused QKV weight
        "wo": w(ks[3], (n_heads * hd, dim)),
        "w1": w(ks[4], (dim, hidden)),
        "w3": w(ks[5], (dim, hidden)),
        "w2": w(ks[6], (hidden, dim)),
        "attn_norm_w": jnp.ones((dim,), jnp.float32),
        "ffn_norm_w": jnp.ones((dim,), jnp.float32),
    }

    x = jax.random.normal(ks[7], (B, S, dim), dtype=jnp.float32)
    freqs = precompute_freqs_cis(S, hd)

    out = jax.block_until_ready(linear_transformer_block(x, freqs, params))
    ref = _reference(x, freqs, params)

    assert out.shape == (B, S, dim)
    err = float(jnp.max(jnp.abs(out - ref)))
    assert jnp.allclose(out, ref, rtol=2e-3, atol=2e-3), f"mismatch vs reference: {err}"

    print("KERNEL_OK")
</pallas_src>

<mosaic_0001>
module attributes {stable_mosaic.version = 11 : i64} {
  func.func @_norm_matmul_kernel(%arg0: i32, %arg1: i32, %arg2: memref<16x32xf32, #tpu.memory_space<vmem>>, %arg3: memref<1x32xf32, #tpu.memory_space<vmem>>, %arg4: memref<32x64xbf16, #tpu.memory_space<vmem>>, %arg5: memref<16x64xbf16, #tpu.memory_space<vmem>>, %arg6: memref<16x32xbf16, #tpu.memory_space<vmem>>) attributes {dimension_semantics = [#tpu.dimension_semantics<parallel>, #tpu.dimension_semantics<arbitrary>], iteration_bounds = array<i64: 1, 1>, scalar_prefetch = 0 : i64, scratch_operands = 1 : i64, tpu.core_type = #tpu.core_type<tc>, window_params = [{transform_indices = @transform_0, window_bounds = array<i64: 16, 32>}, {pipeline_mode = #tpu.pipeline_mode<synchronous>, transform_indices = @transform_1, window_bounds = array<i64: 1, 32>}, {transform_indices = @transform_2, window_bounds = array<i64: 32, 64>}, {transform_indices = @transform_3, window_bounds = array<i64: 16, 64>}]} {
    %c0_i32 = arith.constant 0 : i32
    %0 = arith.cmpi eq, %arg1, %c0_i32 : i32
    %1 = arith.extui %0 : i1 to i32
    %c0_i32_0 = arith.constant 0 : i32
    %2 = arith.cmpi ne, %1, %c0_i32_0 : i32
    scf.if %2 {
      %c0_6 = arith.constant 0 : index
      %c0_7 = arith.constant 0 : index
      %8 = vector.load %arg2[%c0_6, %c0_7] : memref<16x32xf32, #tpu.memory_space<vmem>>, vector<16x32xf32>
      %9 = arith.mulf %8, %8 : vector<16x32xf32>
      %cst_8 = arith.constant dense<0.000000e+00> : vector<16xf32>
      %10 = vector.multi_reduction <add>, %9, %cst_8 [1] : vector<16x32xf32> to vector<16xf32>
      %11 = vector.shape_cast %10 : vector<16xf32> to vector<16x1xf32>
      %cst_9 = arith.constant 3.200000e+01 : f32
      %12 = vector.broadcast %cst_9 : f32 to vector<16x1xf32>
      %13 = arith.divf %11, %12 : vector<16x1xf32>
      %cst_10 = arith.constant 9.99999974E-6 : f32
      %14 = vector.broadcast %cst_10 : f32 to vector<16x1xf32>
      %15 = arith.addf %13, %14 : vector<16x1xf32>
      %16 = math.rsqrt %15 : vector<16x1xf32>
      %17 = vector.broadcast %16 : vector<16x1xf32> to vector<16x32xf32>
      %18 = arith.mulf %8, %17 : vector<16x32xf32>
      %c0_11 = arith.constant 0 : index
      %c0_12 = arith.constant 0 : index
      %19 = vector.load %arg3[%c0_11, %c0_12] : memref<1x32xf32, #tpu.memory_space<vmem>>, vector<1x32xf32>
      %20 = vector.broadcast %19 : vector<1x32xf32> to vector<16x32xf32>
      %21 = arith.mulf %18, %20 : vector<16x32xf32>
      %22 = arith.truncf %21 : vector<16x32xf32> to vector<16x32xbf16>
      %c0_13 = arith.constant 0 : index
      %c0_14 = arith.constant 0 : index
      %23 = vector.load %arg6[%c0_13, %c0_14] : memref<16x32xbf16, #tpu.memory_space<vmem>>, vector<16x32xbf16>
      tpu.vector_store %arg6[%c0_13, %c0_14], %22 {strides = array<i32>} : memref<16x32xbf16, #tpu.memory_space<vmem>>, vector<16x32xbf16>,
    } else {
    }
    %c0 = arith.constant 0 : index
    %c0_1 = arith.constant 0 : index
    %3 = vector.load %arg6[%c0, %c0_1] : memref<16x32xbf16, #tpu.memory_space<vmem>>, vector<16x32xbf16>
    %c0_2 = arith.constant 0 : index
    %c0_3 = arith.constant 0 : index
    %4 = vector.load %arg4[%c0_2, %c0_3] : memref<32x64xbf16, #tpu.memory_space<vmem>>, vector<32x64xbf16>
    %cst = arith.constant dense<0.000000e+00> : vector<16x64xf32>
    %5 = tpu.matmul %3, %4, %cst {dimension_numbers = #tpu.dot_dimension_numbers<[1], [0], [0], [1], [0, 0, 1, 1], [], []>} : vector<16x32xbf16>, vector<32x64xbf16>, vector<16x64xf32> -> vector<16x64xf32>
    %6 = arith.truncf %5 : vector<16x64xf32> to vector<16x64xbf16>
    %c0_4 = arith.constant 0 : index
    %c0_5 = arith.constant 0 : index
    %7 = vector.load %arg5[%c0_4, %c0_5] : memref<16x64xbf16, #tpu.memory_space<vmem>>, vector<16x64xbf16>
    tpu.vector_store %arg5[%c0_4, %c0_5], %6 {strides = array<i32>} : memref<16x64xbf16, #tpu.memory_space<vmem>>, vector<16x64xbf16>,
    return
  }
  func.func @transform_0(%arg0: i32, %arg1: i32) -> (i32, i32) {
    %c0_i32 = arith.constant 0 : i32
    %c0_i32_0 = arith.constant 0 : i32
    return %arg0, %c0_i32 : i32, i32
  }
  func.func @transform_1(%arg0: i32, %arg1: i32) -> (i32, i32) {
    %c0_i32 = arith.constant 0 : i32
    %c0_i32_0 = arith.constant 0 : i32
    %c0_i32_1 = arith.constant 0 : i32
    return %c0_i32, %c0_i32_0 : i32, i32
  }
  func.func @transform_2(%arg0: i32, %arg1: i32) -> (i32, i32) {
    %c0_i32 = arith.constant 0 : i32
    %c0_i32_0 = arith.constant 0 : i32
    return %c0_i32, %arg1 : i32, i32
  }
  func.func @transform_3(%arg0: i32, %arg1: i32) -> (i32, i32) {
    %c0_i32 = arith.constant 0 : i32
    return %arg0, %arg1 : i32, i32
  }
}

</mosaic_0001>

<llo_original>
// kernel: tpu_custom_call.1
$region0: #{tpu_custom_call.1}
  #allocation0 [shape = 'u32[]', space=smem, size = 0x4, offset = 0x4, fixed_abs, tag = 'smem constant byte address 0x4 - core index']
  #allocation1 [shape = 'u32[144,128]{1,0:T(1,128)}', space=vmem, size = 0x12000, scoped, tag = 'internal scratch']
  #allocation2 [shape = 'bf16[16,32]{1,0:T(16,128)(2,1)}', space=vmem, size = 0x1000, scoped, tag = 'scratch operand']
  %s0 = inlined_call_operand.hbm [shape: f32[16,32], index: 0, kind: input, shape index: {}]
  %s1 = inlined_call_operand.hbm [shape: f32[1,32], index: 1, kind: input, shape index: {}]
  %s2 = inlined_call_operand.hbm [shape: bf16[32,64], index: 2, kind: input, shape index: {}]
  %s3 = inlined_call_operand.hbm [shape: bf16[16,64], index: 3, kind: output, shape index: {}]
  %s4 = sld [smem:[#allocation0]]
  $region38: #{tpu_custom_call.1} parent=0
    _
  %s6 = ssub.s32 1, %s4
  %s7 = scalar_select 0, %s6, %s4
  $region1: #{tpu_custom_call.1} parent=0
    #allocation3 [shape = 'u8[8192]{0}', space=vmem, size = 0x2000, scoped, tag = 'input window, operand 0, single buffered']
    #allocation4 [shape = 's32[1]{0}', space=sflag, size = 0x4, scoped, tag = 'scoped memory for tpu_custom_call.1']
    #allocation5 [shape = 's32[1]{0}', space=sflag, size = 0x4, scoped, tag = 'scoped memory for tpu_custom_call.1']
    #allocation6 [shape = 'u8[512]{0}', space=vmem, size = 0x400, scoped, tag = 'input window, operand 1, single buffered']
    #allocation7 [shape = 's32[1]{0}', space=sflag, size = 0x4, scoped, tag = 'scoped memory for tpu_custom_call.1']
    #allocation8 [shape = 'u8[8192]{0}', space=vmem, size = 0x2000, scoped, tag = 'input window, operand 2, single buffered']
    #allocation9 [shape = 'u8[4096]{0}', space=vmem, size = 0x1000, scoped, tag = 'output window, operand 0, single buffered']
    %8 = vsyncpa [#allocation4], 0
    %9 = vsyncpa [#allocation7], 0
    %10 = vsyncpa [#allocation5], 0
    // Predicated region
    $region2: #{tpu_custom_call.1} parent=1 // pred_check
      _
    $region3: #{tpu_custom_call.1} parent=1 // pred_check_branch
      %12 = sbr.rel (0) target = $region5
    $region4: #{tpu_custom_call.1} parent=1 // pred_region
      %s14 = ssub.s32 256, 256
      %15 = vsyncadd [#allocation4], %s14
      %s16 = sshll.u32 [#allocation3], 4
      %s17 = int_to_ptr.vmem [resolvable:$true] %s16
      %22 = dma.hbm_to_vmem [thread:$0]  %s0, 256, %s17, [#allocation4], 128, 128, 8
    $region5: #{tpu_custom_call.1} parent=1 // pred_fallthru
      _
    // Predicated region
    $region6: #{tpu_custom_call.1} parent=1 // pred_check
      _
    $region7: #{tpu_custom_call.1} parent=1 // pred_check_branch
      %24 = sbr.rel (0) target = $region9
    $region8: #{tpu_custom_call.1} parent=1 // pred_region
      %s26 = ssub.s32 16, 16
      %27 = vsyncadd [#allocation7], %s26
      %s29 = sshll.u32 [#allocation6], 4
      %s30 = int_to_ptr.vmem [resolvable:$true] %s29
      %32 = dma.hbm_to_vmem [thread:$0]  %s1, 16, %s30, [#allocation7]
    $region9: #{tpu_custom_call.1} parent=1 // pred_fallthru
      _
    // Predicated region
    $region10: #{tpu_custom_call.1} parent=1 // pred_check
      _
    $region11: #{tpu_custom_call.1} parent=1 // pred_check_branch
      %34 = sbr.rel (0) target = $region13
    $region12: #{tpu_custom_call.1} parent=1 // pred_region
      %s36 = ssub.s32 256, 256
      %37 = vsyncadd [#allocation7], %s36
      %s38 = sshll.u32 [#allocation8], 4
      %s39 = int_to_ptr.vmem [resolvable:$true] %s38
      %44 = dma.hbm_to_vmem [thread:$0]  %s2, 256, %s39, [#allocation7], 64, 64, 4
    $region13: #{tpu_custom_call.1} parent=1 // pred_fallthru
      _
    // Predicated region
    $region14: #{tpu_custom_call.1} parent=1 // pred_check
      _
    $region15: #{tpu_custom_call.1} parent=1 // pred_check_branch
      %46 = sbr.rel (0) target = $region17
    $region16: #{tpu_custom_call.1} parent=1 // pred_region
      %47 = dma.done [#allocation4], 256
    $region17: #{tpu_custom_call.1} parent=1 // pred_fallthru
      _
    // Predicated region
    $region18: #{tpu_custom_call.1} parent=1 // pred_check
      _
    $region19: #{tpu_custom_call.1} parent=1 // pred_check_branch
      %49 = sbr.rel (0) target = $region21
    $region20: #{tpu_custom_call.1} parent=1 // pred_region
      %50 = dma.done [#allocation7], 16
    $region21: #{tpu_custom_call.1} parent=1 // pred_fallthru
      _
    // Predicated region
    $region22: #{tpu_custom_call.1} parent=1 // pred_check
      _
    $region23: #{tpu_custom_call.1} parent=1 // pred_check_branch
      %52 = sbr.rel (0) target = $region25
    $region24: #{tpu_custom_call.1} parent=1 // pred_region
      %53 = dma.done [#allocation7], 256
    $region25: #{tpu_custom_call.1} parent=1 // pred_fallthru
      _
    %p55 = scmp.eq.s32.totalorder 0, 0
    // Predicated region
    $region26: #{tpu_custom_call.1} parent=1 // pred_check
      %p56 = pneg %p55
    $region27: #{tpu_custom_call.1} parent=1 // pred_check_branch
      %58 = sbr.rel (%p56) target = $region29
    $region28: #{tpu_custom_call.1} parent=1 // pred_region
      %v59 = vld [vmem:[#allocation3] sm:$0xff]
      %v60 = vld [vmem:[#allocation3 + $0x8] sm:$0xff]
      %v61 = vmul.f32 %v59, %v59
      %v62 = vmul.f32 %v60, %v60
      %vm63 = vcmask 261120
      %v64 = vsel %vm63, %v61, 0.0
      %65 = vadd.xlane.f32.xlu0 %v64
      %v66 = vpop.xlane.xlu0 %65
      %v67 = vsel %vm63, %v62, 0.0
      %68 = vadd.xlane.f32.xlu0 %v67
      %v69 = vpop.xlane.xlu0 %68
      %v70 = vrcp.pop 32.0
      %v71 = vmul.f32 %v66, %v70
      %v72 = vmul.f32 %v69, %v70
      %v73 = vadd.f32 %v71, 1e-05
      %v74 = vadd.f32 %v72, 1e-05
      %v75 = vrsqrt.pop %v73
      %v76 = vrsqrt.pop %v74
      %v77 = vmul.f32 %v59, %v75
      %v78 = vmul.f32 %v60, %v76
      %v79 = vld [vmem:[#allocation6] sm:$0x1]
      %v81 = vlaneseq
      %v82 = vshrl.u32 %v81, 7
      %v83 = vsub.s32 0, %v82
      %v84 = vrot.slane %v79, %v83
      %v86 = vmul.f32 %v77, %v84
      %v87 = vmul.f32 %v78, %v84
      %v88 = vpack.c.bf16 %v87, %v86
      %89 = vst.msk [vmem:[#allocation2] sm:$0xff] %vm63, %v88
    $region29: #{tpu_custom_call.1} parent=1 // pred_fallthru
      _
    %v90 = vld [vmem:[#allocation2] sm:$0xff]
    %v91 = vld [vmem:[#allocation8] sm:$0xf]
    %v92 = vld [vmem:[#allocation8 + $0x4] sm:$0xf]
    %v93 = vld [vmem:[#allocation8 + $0x8] sm:$0xf]
    %v94 = vld [vmem:[#allocation8 + $0xc] sm:$0xf]
    %v99 = vunpack.c.l.b16 %v91
    %v100 = vunpack.c.l.b16 %v92
    %v101 = vunpack.c.l.b16 %v93
    %v102 = vunpack.c.l.b16 %v94
    %v103 = vpack.c.b16 %v100, %v99
    %v104 = vpack.c.b16 %v102, %v101
    %vm107 = vcmask 261120
    %v109 = vsel %vm107, %v90, 0
    %111 = vmatprep.subr.bf16.mxu0 0
    %112 = vmatpush1.bf16.msra.mxu0 %v103
    %113 = vmatprep.subr.bf16.mxu0 0
    %114 = vmatpush1.bf16.msra.mxu0 %v104
    %115 = vmatprep.subr.bf16.mxu0 0
    %116 = vmatpush1.bf16.msra.mxu0 0
    %117 = vmatprep.subr.bf16.mxu0 0
    %118 = vmatpush1.bf16.msra.mxu0 0
    %119 = vmatprep.subr.bf16.mxu0 0
    %120 = vmatpush1.bf16.msra.mxu0 0
    %121 = vmatprep.subr.bf16.mxu0 0
    %122 = vmatpush1.bf16.msra.mxu0 0
    %123 = vmatprep.subr.bf16.mxu0 0
    %124 = vmatpush1.bf16.msra.mxu0 0
    %125 = vmatprep.subr.bf16.mxu0 0
    %126 = vmatpush1.bf16.msra.mxu0 0
    %127 = vmatprep.subr.bf16.mxu0 0
    %128 = vmatpush1.bf16.msra.mxu0 0
    %129 = vmatprep.subr.bf16.mxu0 0
    %130 = vmatpush1.bf16.msra.mxu0 0
    %131 = vmatprep.subr.bf16.mxu0 0
    %132 = vmatpush1.bf16.msra.mxu0 0
    %133 = vmatprep.subr.bf16.mxu0 0
    %134 = vmatpush1.bf16.msra.mxu0 0
    %135 = vmatprep.subr.bf16.mxu0 0
    %136 = vmatpush1.bf16.msra.mxu0 0
    %137 = vmatprep.subr.bf16.mxu0 0
    %138 = vmatpush1.bf16.msra.mxu0 0
    %139 = vmatprep.subr.bf16.mxu0 0
    %140 = vmatpush1.bf16.msra.mxu0 0
    %141 = vmatprep.subr.bf16.mxu0 0
    %142 = vmatpush1.bf16.msra.mxu0 0
    %143 = vmatprep.mubr.bf16.mxu0 0
    %144 = vmatmul.mubr.bf16.gmra.mrb[0].mxu0 %v109
    %v145 = vpop.f32.mrb[0].mxu0
    %v146 = vadd.f32 0.0, %v145
    %v147 = vpop.f32.mrb[0].mxu0
    %v148 = vpop.f32.mrb[0].mxu0
    %v149 = vadd.f32 0.0, %v148
    %v150 = vpop.f32.mrb[0].mxu0
    %151 = vdwg.mxu0
    %v152 = vpack.c.bf16 %v149, %v146
    %v154 = vunpack.c.l.b16 %v152
    %v155 = vunpack.c.h.b16 %v152
    %v156 = vpack.c.b16 %v154, %v154
    %v157 = vpack.c.b16 %v155, %v155
    %vm160 = vcmask 519168
    %161 = vst.msk [vmem:[#allocation9] sm:$0xf] %vm160, %v156
    %162 = vst.msk [vmem:[#allocation9 + $0x4] sm:$0xf] %vm160, %v157
    // Predicated region
    $region30: #{tpu_custom_call.1} parent=1 // pred_check
      _
    $region31: #{tpu_custom_call.1} parent=1 // pred_check_branch
      %164 = sbr.rel (0) target = $region33
    $region32: #{tpu_custom_call.1} parent=1 // pred_region
      %s166 = ssub.s32 128, 128
      %167 = vsyncadd [#allocation5], %s166
      %s168 = sshll.u32 [#allocation9], 4
      %s169 = int_to_ptr.vmem [resolvable:$true] %s168
      %174 = dma.vmem_to_hbm [thread:$0]  %s169, 128, %s3, [#allocation5], 64, 64, 4
    $region33: #{tpu_custom_call.1} parent=1 // pred_fallthru
      _
    // Predicated region
    $region34: #{tpu_custom_call.1} parent=1 // pred_check
      _
    $region35: #{tpu_custom_call.1} parent=1 // pred_check_branch
      %176 = sbr.rel (0) target = $region37
    $region36: #{tpu_custom_call.1} parent=1 // pred_region
      %177 = dma.done [#allocation5], 128
    $region37: #{tpu_custom_call.1} parent=1 // pred_fallthru
      _
    %178 = vsyncpa [#allocation4], 1
    %179 = vsyncpa [#allocation7], 1
    %180 = vsyncpa [#allocation5], 1

</llo_original>
